<compile_context>
chip_gen: v6e
topology: v6e:2x2x1
jax: 0.10.0
libtpu: 0.0.40
codegen_flags: <defaults>
</compile_context>

<pallas_src>
import functools
import math

import jax
import jax.numpy as jnp
from jax.experimental import pallas as pl
from jax.experimental.pallas import tpu as pltpu

TEMPERATURE = 0.5
EPS = 1e-12  # matches torch.nn.functional.normalize default eps


def _simclr_sum_exp_kernel(x1s_ref, x2n_ref, out_ref, acc_ref, *, shift):
    """Accumulates per-row sum_j exp(x1s[i] . x2n[j] - shift) over column blocks."""
    k = pl.program_id(1)

    @pl.when(k == 0)
    def _init():
        acc_ref[...] = jnp.zeros_like(acc_ref)

    # (tm, tk) logits tile; contraction over C on both operands — no transpose.
    # Operands stay in their (possibly bf16) storage dtype; accumulate in f32.
    logits = jax.lax.dot_general(
        x1s_ref[...], x2n_ref[...],
        dimension_numbers=(((1,), (1,)), ((), ())),
        preferred_element_type=jnp.float32)

    # Rows are unit-norm and 1/T is folded into x1s, so logits are bounded by
    # 1/T; for 1/T <= 80 exp cannot overflow and the shift is dropped (static).
    if shift == 0.0:
        e = jnp.exp(logits)
    else:
        e = jnp.exp(logits - shift)

    # Lane-wide accumulation: sum the tk/128 lane groups with plain VALU adds
    # (static lane-aligned slices -> no relayout, no per-step XLU reduce).
    tm_blk, tk_blk = e.shape
    part = e[:, 0:128]
    for g in range(1, tk_blk // 128):
        part = part + e[:, g * 128:(g + 1) * 128]
    acc_ref[...] += part

    @pl.when(k == pl.num_programs(1) - 1)
    def _finalize():
        # Single cross-lane reduce per row block.
        out_ref[...] = jnp.sum(acc_ref[...], axis=1, keepdims=True)


def _round_up(x, m):
    return (x + m - 1) // m * m


def _working_set_bytes(tm, tk, c, itemsize):
    ws = 2 * tm * c * itemsize          # x1s row block (double buffered)
    ws += 2 * tk * c * itemsize         # x2n column block (double buffered)
    ws += 2 * tm * tk * 4               # logits + exp intermediates (f32)
    ws += tm * 128 * 4                  # lane-wide accumulator scratch
    ws += 2 * tm * 4                    # output block
    ws += 1 << 20                       # slack
    return ws


def _largest_row_tile(n_pad, cap=512):
    for d in range(min(cap, n_pad), 7, -8):
        if n_pad % d == 0:
            return d
    return 8


def _pick_tiles(n, c, itemsize, vmem_budget):
    """Pick (tm, tk, n_pad) under a generation-aware VMEM budget."""
    n_pad0 = _round_up(max(n, 1), 128)
    candidates = []
    for tk in (n_pad0, 1024, 512, 256, 128):   # prefer resident x2 (tk == n_pad)
        if tk <= n_pad0 and tk % 128 == 0 and tk not in candidates:
            candidates.append(tk)

    chosen = None
    for tk in candidates:
        n_pad = _round_up(n, tk)
        tm = _largest_row_tile(n_pad)
        if _working_set_bytes(tm, tk, c, itemsize) <= vmem_budget:
            chosen = (tm, tk, n_pad)
            break
    if chosen is None:                          # extreme C: take smallest tiles
        tk = candidates[-1]
        n_pad = _round_up(n, tk)
        chosen = (_largest_row_tile(n_pad), tk, n_pad)
    return chosen


def simclr_loss_ptv(x1, x2, *, temperature=TEMPERATURE, use_bf16_mxu=True,
                    tm=None, tk=None):
    """x1, x2: (N, C) embeddings. Returns scalar f32 loss (mean CE)."""
    n, c = x1.shape
    assert x2.shape == (n, c)
    inv_temp = 1.0 / float(temperature)
    # Unit-norm rows => |logit| <= 1/T; constant shift only needed if exp(1/T)
    # could overflow f32.
    shift = 0.0 if inv_temp <= 80.0 else inv_temp

    # ---- O(N*C) mem-bound pre-pass in XLA (runs once, not once per row block).
    x1f = x1.astype(jnp.float32)
    x2f = x2.astype(jnp.float32)
    x1n = x1f / jnp.maximum(jnp.linalg.norm(x1f, axis=1, keepdims=True), EPS)
    x2n = x2f / jnp.maximum(jnp.linalg.norm(x2f, axis=1, keepdims=True), EPS)
    x1s = x1n * inv_temp                      # fold 1/T into the left operand

    if jnp.issubdtype(x1.dtype, jnp.floating) and jnp.dtype(x1.dtype).itemsize <= 2:
        op_dtype = x1.dtype                   # already bf16 / f16
    else:
        op_dtype = jnp.bfloat16 if use_bf16_mxu else jnp.float32
    a = x1s.astype(op_dtype)
    b = x2n.astype(op_dtype)

    # Target (diagonal) logits: gt[r] == r (single device), so the target logit
    # of row r is x1n[r].x2n[r]/T — an O(N*C) row-wise dot done in the wrapper.
    diag = jnp.sum(x1s * x2n, axis=1)

    # ---- generation-aware tile selection / VMEM budgeting.
    itemsize = jnp.dtype(op_dtype).itemsize
    vmem_cap = 64 * 1024 * 1024               # conservative (v7x per-TC) default
    try:
        vmem_cap = int(pltpu.get_tpu_info().vmem_capacity_bytes)
    except Exception:
        pass
    vmem_budget = int(vmem_cap * 0.7)

    if tm is not None and tk is not None:
        assert tm % 8 == 0 and tk % 128 == 0, "tm must be %8, tk must be %128"
        n_pad = _round_up(n, math.lcm(tm, tk))
    else:
        tm, tk, n_pad = _pick_tiles(n, c, itemsize, vmem_budget)
    ws = _working_set_bytes(tm, tk, c, itemsize)
    vmem_limit = min(int(vmem_cap * 0.9), max(32 * 1024 * 1024, ws + (8 << 20)))

    pad = n_pad - n
    if pad:
        a = jnp.pad(a, ((0, pad), (0, 0)))
        b = jnp.pad(b, ((0, pad), (0, 0)))

    grid = (n_pad // tm, n_pad // tk)
    # tk == n_pad => constant column index map => x2n resident, read from HBM once.
    x2_hbm_reads = 1 if tk == n_pad else grid[0]

    kernel = functools.partial(_simclr_sum_exp_kernel, shift=shift)

    row_sum = pl.pallas_call(
        kernel,
        out_shape=jax.ShapeDtypeStruct((n_pad, 1), jnp.float32),
        grid_spec=pltpu.PrefetchScalarGridSpec(
            num_scalar_prefetch=0,
            grid=grid,
            in_specs=[
                pl.BlockSpec((tm, c), lambda i, k: (i, 0)),   # x1s row block
                pl.BlockSpec((tk, c), lambda i, k: (k, 0)),   # x2n column block
            ],
            out_specs=pl.BlockSpec((tm, 1), lambda i, k: (i, 0)),
            scratch_shapes=[
                pltpu.VMEM((tm, 128), jnp.float32),  # lane-wide running exp-sum
            ],
        ),
        compiler_params=pltpu.CompilerParams(
            # Row-block axis is independent (megacore-shardable); the column /
            # reduction axis stays sequential for the accumulator.
            dimension_semantics=("parallel", "arbitrary"),
            vmem_limit_bytes=vmem_limit,
        ),
        cost_estimate=pl.CostEstimate(
            flops=int(2 * n_pad * n_pad * c),
            transcendentals=int(n_pad * n_pad),
            bytes_accessed=int((1 + x2_hbm_reads) * n_pad * c * itemsize
                               + n_pad * 4),
        ),
    )(a, b)

    l_valid = row_sum[:n, 0]
    if pad:
        # Zero-padded x2 rows give logit == 0 exactly, i.e. exp(0 - shift) each.
        l_valid = l_valid - float(pad) * math.exp(-shift)
    lse = jnp.log(l_valid) + shift
    return jnp.mean(lse - diag)


def _reference(x1, x2, temperature=TEMPERATURE):
    x1 = x1.astype(jnp.float32)
    x2 = x2.astype(jnp.float32)
    x1n = x1 / jnp.maximum(jnp.linalg.norm(x1, axis=1, keepdims=True), EPS)
    x2n = x2 / jnp.maximum(jnp.linalg.norm(x2, axis=1, keepdims=True), EPS)
    logits = (x1n @ x2n.T) / temperature
    n = x1.shape[0]
    lse = jax.nn.logsumexp(logits, axis=1)
    return jnp.mean(lse - logits[jnp.arange(n), jnp.arange(n)])


if __name__ == "__main__":
    key = jax.random.PRNGKey(0)
    k1, k2, k3, k4 = jax.random.split(key, 4)

    # Small test 1: N=16, C=32 — auto tiles (padded to 128, pad-correction path).
    N1, C1 = 16, 32
    x1a = jax.random.normal(k1, (N1, C1), dtype=jnp.float32)
    x2a = jax.random.normal(k2, (N1, C1), dtype=jnp.float32)
    ref1 = _reference(x1a, x2a)

    loss_f32 = jax.block_until_ready(simclr_loss_ptv(x1a, x2a, use_bf16_mxu=False))
    assert jnp.allclose(loss_f32, ref1, rtol=1e-4, atol=1e-4), (loss_f32, ref1)

    loss_bf16 = jax.block_until_ready(simclr_loss_ptv(x1a, x2a, use_bf16_mxu=True))
    assert jnp.allclose(loss_bf16, ref1, rtol=3e-2, atol=3e-2), (loss_bf16, ref1)

    # Small test 2: N=300, C=32 — forced multi-block grid (3x3) + padding path.
    N2, C2 = 300, 32
    x1b = jax.random.normal(k3, (N2, C2), dtype=jnp.float32)
    x2b = jax.random.normal(k4, (N2, C2), dtype=jnp.float32)
    ref2 = _reference(x1b, x2b)

    loss_tiled = jax.block_until_ready(
        simclr_loss_ptv(x1b, x2b, use_bf16_mxu=False, tm=128, tk=128))
    assert jnp.allclose(loss_tiled, ref2, rtol=1e-4, atol=1e-4), (loss_tiled, ref2)

    loss_auto = jax.block_until_ready(simclr_loss_ptv(x1b, x2b, use_bf16_mxu=True))
    assert jnp.allclose(loss_auto, ref2, rtol=3e-2, atol=3e-2), (loss_auto, ref2)

    print("KERNEL_OK")
</pallas_src>

<mosaic_0001>
module attributes {stable_mosaic.version = 11 : i64} {
  func.func @_simclr_sum_exp_kernel(%arg0: i32, %arg1: i32, %arg2: memref<128x32xf32, #tpu.memory_space<vmem>>, %arg3: memref<128x32xf32, #tpu.memory_space<vmem>>, %arg4: memref<128x1xf32, #tpu.memory_space<vmem>>, %arg5: memref<128x128xf32, #tpu.memory_space<vmem>>) attributes {dimension_semantics = [#tpu.dimension_semantics<parallel>, #tpu.dimension_semantics<arbitrary>], iteration_bounds = array<i64: 1, 1>, scalar_prefetch = 0 : i64, scratch_operands = 1 : i64, tpu.core_type = #tpu.core_type<tc>, window_params = [{transform_indices = @transform_0, window_bounds = array<i64: 128, 32>}, {transform_indices = @transform_1, window_bounds = array<i64: 128, 32>}, {transform_indices = @transform_2, window_bounds = array<i64: 128, 1>}]} {
    %c0_i32 = arith.constant 0 : i32
    %0 = arith.cmpi eq, %arg1, %c0_i32 : i32
    %1 = arith.extui %0 : i1 to i32
    %c0_i32_0 = arith.constant 0 : i32
    %2 = arith.cmpi ne, %1, %c0_i32_0 : i32
    scf.if %2 {
      %cst_10 = arith.constant 0.000000e+00 : f32
      %13 = vector.broadcast %cst_10 : f32 to vector<128x128xf32>
      %c0_11 = arith.constant 0 : index
      %c0_12 = arith.constant 0 : index
      %14 = vector.load %arg5[%c0_11, %c0_12] : memref<128x128xf32, #tpu.memory_space<vmem>>, vector<128x128xf32>
      tpu.vector_store %arg5[%c0_11, %c0_12], %13 {strides = array<i32>} : memref<128x128xf32, #tpu.memory_space<vmem>>, vector<128x128xf32>,
    } else {
    }
    %c0 = arith.constant 0 : index
    %c0_1 = arith.constant 0 : index
    %3 = vector.load %arg2[%c0, %c0_1] : memref<128x32xf32, #tpu.memory_space<vmem>>, vector<128x32xf32>
    %c0_2 = arith.constant 0 : index
    %c0_3 = arith.constant 0 : index
    %4 = vector.load %arg3[%c0_2, %c0_3] : memref<128x32xf32, #tpu.memory_space<vmem>>, vector<128x32xf32>
    %cst = arith.constant dense<0.000000e+00> : vector<128x128xf32>
    %5 = tpu.matmul %3, %4, %cst {dimension_numbers = #tpu.dot_dimension_numbers<[1], [1], [0], [0], [0, 0, 1, 0], [], []>} : vector<128x32xf32>, vector<128x32xf32>, vector<128x128xf32> -> vector<128x128xf32>
    %6 = math.exp %5 : vector<128x128xf32>
    %c0_4 = arith.constant 0 : index
    %c0_5 = arith.constant 0 : index
    %7 = vector.load %arg5[%c0_4, %c0_5] : memref<128x128xf32, #tpu.memory_space<vmem>>, vector<128x128xf32>
    %8 = arith.addf %7, %6 : vector<128x128xf32>
    %c0_6 = arith.constant 0 : index
    %c0_7 = arith.constant 0 : index
    %9 = vector.load %arg5[%c0_6, %c0_7] : memref<128x128xf32, #tpu.memory_space<vmem>>, vector<128x128xf32>
    tpu.vector_store %arg5[%c0_6, %c0_7], %8 {strides = array<i32>} : memref<128x128xf32, #tpu.memory_space<vmem>>, vector<128x128xf32>,
    %c0_i32_8 = arith.constant 0 : i32
    %10 = arith.cmpi eq, %arg1, %c0_i32_8 : i32
    %11 = arith.extui %10 : i1 to i32
    %c0_i32_9 = arith.constant 0 : i32
    %12 = arith.cmpi ne, %11, %c0_i32_9 : i32
    scf.if %12 {
      %c0_10 = arith.constant 0 : index
      %c0_11 = arith.constant 0 : index
      %13 = vector.load %arg5[%c0_10, %c0_11] : memref<128x128xf32, #tpu.memory_space<vmem>>, vector<128x128xf32>
      %cst_12 = arith.constant dense<0.000000e+00> : vector<128xf32>
      %14 = vector.multi_reduction <add>, %13, %cst_12 [1] : vector<128x128xf32> to vector<128xf32>
      %15 = vector.shape_cast %14 : vector<128xf32> to vector<128x1xf32>
      %c0_13 = arith.constant 0 : index
      %c0_14 = arith.constant 0 : index
      %16 = vector.load %arg4[%c0_13, %c0_14] : memref<128x1xf32, #tpu.memory_space<vmem>>, vector<128x1xf32>
      tpu.vector_store %arg4[%c0_13, %c0_14], %15 {strides = array<i32>} : memref<128x1xf32, #tpu.memory_space<vmem>>, vector<128x1xf32>,
    } else {
    }
    return
  }
  func.func @transform_0(%arg0: i32, %arg1: i32) -> (i32, i32) {
    %c0_i32 = arith.constant 0 : i32
    %c0_i32_0 = arith.constant 0 : i32
    return %arg0, %c0_i32 : i32, i32
  }
  func.func @transform_1(%arg0: i32, %arg1: i32) -> (i32, i32) {
    %c0_i32 = arith.constant 0 : i32
    %c0_i32_0 = arith.constant 0 : i32
    return %arg1, %c0_i32 : i32, i32
  }
  func.func @transform_2(%arg0: i32, %arg1: i32) -> (i32, i32) {
    %c0_i32 = arith.constant 0 : i32
    %c0_i32_0 = arith.constant 0 : i32
    return %arg0, %c0_i32 : i32, i32
  }
}

</mosaic_0001>

<llo_original>
// kernel: tpu_custom_call.1
$region0: #{tpu_custom_call.1}
  #allocation0 [shape = 'u32[]', space=smem, size = 0x4, offset = 0x4, fixed_abs, tag = 'smem constant byte address 0x4 - core index']
  #allocation1 [shape = 'u32[144,128]{1,0:T(1,128)}', space=vmem, size = 0x12000, scoped, tag = 'internal scratch']
  #allocation2 [shape = 'f32[128,128]{1,0:T(8,128)}', space=vmem, size = 0x10000, scoped, tag = 'scratch operand']
  %s0 = inlined_call_operand.vmem [shape: f32[128,32], index: 0, kind: input, shape index: {}]
  %s1 = inlined_call_operand.vmem [shape: f32[128,32], index: 1, kind: input, shape index: {}]
  %s2 = inlined_call_operand.vmem [shape: f32[128,1], index: 2, kind: output, shape index: {}]
  %s3 = sld [smem:[#allocation0]]
  $region26: #{tpu_custom_call.1} parent=0
    _
  %s5 = ssub.s32 1, %s3
  %s6 = scalar_select 0, %s5, %s3
  // Predicated region
  $region2: #{tpu_custom_call.1} parent=0 // pred_check
    _
  $region3: #{tpu_custom_call.1} parent=0 // pred_check_branch
    %8 = sbr.rel (0) target = $region5
  $region4: #{tpu_custom_call.1} parent=0 // pred_region
    _
  $region5: #{tpu_custom_call.1} parent=0 // pred_fallthru
    _
  // Predicated region
  $region6: #{tpu_custom_call.1} parent=0 // pred_check
    _
  $region7: #{tpu_custom_call.1} parent=0 // pred_check_branch
    %10 = sbr.rel (0) target = $region9
  $region8: #{tpu_custom_call.1} parent=0 // pred_region
    _
  $region9: #{tpu_custom_call.1} parent=0 // pred_fallthru
    _
  %p11 = scmp.eq.s32.totalorder 0, 0
  // Predicated region
  $region10: #{tpu_custom_call.1} parent=0 // pred_check
    %p12 = pneg %p11
  $region11: #{tpu_custom_call.1} parent=0 // pred_check_branch
    %14 = sbr.rel (%p12) target = $region13
  $region12: #{tpu_custom_call.1} parent=0 // pred_region
    %15 = vst [vmem:[#allocation2] sm:$0xff] 0.0
    %16 = vst [vmem:[#allocation2 + $0x8] sm:$0xff] 0.0
    %17 = vst [vmem:[#allocation2 + $0x10] sm:$0xff] 0.0
    %18 = vst [vmem:[#allocation2 + $0x18] sm:$0xff] 0.0
    %19 = vst [vmem:[#allocation2 + $0x20] sm:$0xff] 0.0
    %20 = vst [vmem:[#allocation2 + $0x28] sm:$0xff] 0.0
    %21 = vst [vmem:[#allocation2 + $0x30] sm:$0xff] 0.0
    %22 = vst [vmem:[#allocation2 + $0x38] sm:$0xff] 0.0
    %23 = vst [vmem:[#allocation2 + $0x40] sm:$0xff] 0.0
    %24 = vst [vmem:[#allocation2 + $0x48] sm:$0xff] 0.0
    %25 = vst [vmem:[#allocation2 + $0x50] sm:$0xff] 0.0
    %26 = vst [vmem:[#allocation2 + $0x58] sm:$0xff] 0.0
    %27 = vst [vmem:[#allocation2 + $0x60] sm:$0xff] 0.0
    %28 = vst [vmem:[#allocation2 + $0x68] sm:$0xff] 0.0
    %29 = vst [vmem:[#allocation2 + $0x70] sm:$0xff] 0.0
    %30 = vst [vmem:[#allocation2 + $0x78] sm:$0xff] 0.0
  $region13: #{tpu_custom_call.1} parent=0 // pred_fallthru
    _
  %v31 = vld [vmem:[%s0] sm:$0xff]
  %v32 = vld [vmem:[%s0 + $0x8] sm:$0xff]
  %v33 = vld [vmem:[%s0 + $0x10] sm:$0xff]
  %v34 = vld [vmem:[%s0 + $0x18] sm:$0xff]
  %v35 = vld [vmem:[%s0 + $0x20] sm:$0xff]
  %v36 = vld [vmem:[%s0 + $0x28] sm:$0xff]
  %v37 = vld [vmem:[%s0 + $0x30] sm:$0xff]
  %v38 = vld [vmem:[%s0 + $0x38] sm:$0xff]
  %v39 = vld [vmem:[%s0 + $0x40] sm:$0xff]
  %v40 = vld [vmem:[%s0 + $0x48] sm:$0xff]
  %v41 = vld [vmem:[%s0 + $0x50] sm:$0xff]
  %v42 = vld [vmem:[%s0 + $0x58] sm:$0xff]
  %v43 = vld [vmem:[%s0 + $0x60] sm:$0xff]
  %v44 = vld [vmem:[%s0 + $0x68] sm:$0xff]
  %v45 = vld [vmem:[%s0 + $0x70] sm:$0xff]
  %v46 = vld [vmem:[%s0 + $0x78] sm:$0xff]
  %v47 = vld [vmem:[%s1] sm:$0xff]
  %v48 = vld [vmem:[%s1 + $0x8] sm:$0xff]
  %v49 = vld [vmem:[%s1 + $0x10] sm:$0xff]
  %v50 = vld [vmem:[%s1 + $0x18] sm:$0xff]
  %v51 = vld [vmem:[%s1 + $0x20] sm:$0xff]
  %v52 = vld [vmem:[%s1 + $0x28] sm:$0xff]
  %v53 = vld [vmem:[%s1 + $0x30] sm:$0xff]
  %v54 = vld [vmem:[%s1 + $0x38] sm:$0xff]
  %v55 = vld [vmem:[%s1 + $0x40] sm:$0xff]
  %v56 = vld [vmem:[%s1 + $0x48] sm:$0xff]
  %v57 = vld [vmem:[%s1 + $0x50] sm:$0xff]
  %v58 = vld [vmem:[%s1 + $0x58] sm:$0xff]
  %v59 = vld [vmem:[%s1 + $0x60] sm:$0xff]
  %v60 = vld [vmem:[%s1 + $0x68] sm:$0xff]
  %v61 = vld [vmem:[%s1 + $0x70] sm:$0xff]
  %v62 = vld [vmem:[%s1 + $0x78] sm:$0xff]
  %vm63 = vcmask 261120
  %v65 = vsel %vm63, %v31, 0
  %v68 = vsel %vm63, %v32, 0
  %v71 = vsel %vm63, %v33, 0
  %v74 = vsel %vm63, %v34, 0
  %v77 = vsel %vm63, %v35, 0
  %v80 = vsel %vm63, %v36, 0
  %v83 = vsel %vm63, %v37, 0
  %v86 = vsel %vm63, %v38, 0
  %v89 = vsel %vm63, %v39, 0
  %v92 = vsel %vm63, %v40, 0
  %v95 = vsel %vm63, %v41, 0
  %v98 = vsel %vm63, %v42, 0
  %v101 = vsel %vm63, %v43, 0
  %v104 = vsel %vm63, %v44, 0
  %v107 = vsel %vm63, %v45, 0
  %v110 = vsel %vm63, %v46, 0
  %v113 = vsel %vm63, %v47, 0
  %v116 = vsel %vm63, %v48, 0
  %v119 = vsel %vm63, %v49, 0
  %v122 = vsel %vm63, %v50, 0
  %v125 = vsel %vm63, %v51, 0
  %v128 = vsel %vm63, %v52, 0
  %v131 = vsel %vm63, %v53, 0
  %v134 = vsel %vm63, %v54, 0
  %v137 = vsel %vm63, %v55, 0
  %v140 = vsel %vm63, %v56, 0
  %v143 = vsel %vm63, %v57, 0
  %v146 = vsel %vm63, %v58, 0
  %v149 = vsel %vm63, %v59, 0
  %v152 = vsel %vm63, %v60, 0
  %v155 = vsel %vm63, %v61, 0
  %v158 = vsel %vm63, %v62, 0
  %160 = vmatprep.subr.mxu0 0.0
  %161 = vmatpush1.xpose.msra.mxu0 %v158
  %162 = vmatprep.subr.mxu0 0.0
  %163 = vmatpush1.xpose.msra.mxu0 %v155
  %164 = vmatprep.subr.mxu0 0.0
  %165 = vmatpush1.xpose.msra.mxu0 %v152
  %166 = vmatprep.subr.mxu0 0.0
  %167 = vmatpush1.xpose.msra.mxu0 %v149
  %168 = vmatprep.subr.mxu0 0.0
  %169 = vmatpush1.xpose.msra.mxu0 %v146
  %170 = vmatprep.subr.mxu0 0.0
  %171 = vmatpush1.xpose.msra.mxu0 %v143
  %172 = vmatprep.subr.mxu0 0.0
  %173 = vmatpush1.xpose.msra.mxu0 %v140
  %174 = vmatprep.subr.mxu0 0.0
  %175 = vmatpush1.xpose.msra.mxu0 %v137
  %176 = vmatprep.subr.mxu0 0.0
  %177 = vmatpush1.xpose.msra.mxu0 %v134
  %178 = vmatprep.subr.mxu0 0.0
  %179 = vmatpush1.xpose.msra.mxu0 %v131
  %180 = vmatprep.subr.mxu0 0.0
  %181 = vmatpush1.xpose.msra.mxu0 %v128
  %182 = vmatprep.subr.mxu0 0.0
  %183 = vmatpush1.xpose.msra.mxu0 %v125
  %184 = vmatprep.subr.mxu0 0.0
  %185 = vmatpush1.xpose.msra.mxu0 %v122
  %186 = vmatprep.subr.mxu0 0.0
  %187 = vmatpush1.xpose.msra.mxu0 %v119
  %188 = vmatprep.subr.mxu0 0.0
  %189 = vmatpush1.xpose.msra.mxu0 %v116
  %190 = vmatprep.subr.mxu0 0.0
  %191 = vmatpush1.xpose.msra.mxu0 %v113
  %192 = vmatprep.subr.mxu0 0.0
  %193 = vmatpush2.xpose.msra.mxu0 0.0
  %194 = vmatprep.subr.mxu0 0.0
  %195 = vmatpush2.xpose.msra.mxu0 0.0
  %196 = vmatprep.subr.mxu0 0.0
  %197 = vmatpush2.xpose.msra.mxu0 0.0
  %198 = vmatprep.subr.mxu0 0.0
  %199 = vmatpush2.xpose.msra.mxu0 0.0
  %200 = vmatprep.subr.mxu0 0.0
  %201 = vmatpush2.xpose.msra.mxu0 0.0
  %202 = vmatprep.subr.mxu0 0.0
  %203 = vmatpush2.xpose.msra.mxu0 0.0
  %204 = vmatprep.subr.mxu0 0.0
  %205 = vmatpush2.xpose.msra.mxu0 0.0
  %206 = vmatprep.subr.mxu0 0.0
  %207 = vmatpush2.xpose.msra.mxu0 0.0
  %208 = vmatprep.subr.mxu0 0.0
  %209 = vmatpush2.xpose.msra.mxu0 0.0
  %210 = vmatprep.subr.mxu0 0.0
  %211 = vmatpush2.xpose.msra.mxu0 0.0
  %212 = vmatprep.subr.mxu0 0.0
  %213 = vmatpush2.xpose.msra.mxu0 0.0
  %214 = vmatprep.subr.mxu0 0.0
  %215 = vmatpush2.xpose.msra.mxu0 0.0
  %216 = vmatprep.subr.mxu0 0.0
  %217 = vmatpush2.xpose.msra.mxu0 0.0
  %218 = vmatprep.subr.mxu0 0.0
  %219 = vmatpush2.xpose.msra.mxu0 0.0
  %220 = vmatprep.subr.mxu0 0.0
  %221 = vmatpush2.xpose.msra.mxu0 0.0
  %222 = vmatprep.subr.mxu0 0.0
  %223 = vmatpush2.xpose.msra.mxu0 0.0
  %224 = vmatprep.mubr.f32.mxu0 0.0
  %225 = vmatmul.mubr.f32.gmra.mxu0 %v65
  %v226 = vpop.f32.mrf.mxu0
  %v227 = vadd.f32 0.0, %v226
  %v228 = vpop.f32.mrf.mxu0
  %229 = vmatprep.mubr.f32.mxu0 0.0
  %230 = vmatmul.mubr.f32.gmra.mxu0 %v68
  %v231 = vpop.f32.mrf.mxu0
  %v232 = vadd.f32 0.0, %v231
  %v233 = vpop.f32.mrf.mxu0
  %234 = vmatprep.mubr.f32.mxu0 0.0
  %235 = vmatmul.mubr.f32.gmra.mxu0 %v71
  %v236 = vpop.f32.mrf.mxu0
  %v237 = vadd.f32 0.0, %v236
  %v238 = vpop.f32.mrf.mxu0
  %239 = vmatprep.mubr.f32.mxu0 0.0
  %240 = vmatmul.mubr.f32.gmra.mxu0 %v74
  %v241 = vpop.f32.mrf.mxu0
  %v242 = vadd.f32 0.0, %v241
  %v243 = vpop.f32.mrf.mxu0
  %244 = vmatprep.mubr.f32.mxu0 0.0
  %245 = vmatmul.mubr.f32.gmra.mxu0 %v77
  %v246 = vpop.f32.mrf.mxu0
  %v247 = vadd.f32 0.0, %v246
  %v248 = vpop.f32.mrf.mxu0
  %249 = vmatprep.mubr.f32.mxu0 0.0
  %250 = vmatmul.mubr.f32.gmra.mxu0 %v80
  %v251 = vpop.f32.mrf.mxu0
  %v252 = vadd.f32 0.0, %v251
  %v253 = vpop.f32.mrf.mxu0
  %254 = vmatprep.mubr.f32.mxu0 0.0
  %255 = vmatmul.mubr.f32.gmra.mxu0 %v83
  %v256 = vpop.f32.mrf.mxu0
  %v257 = vadd.f32 0.0, %v256
  %v258 = vpop.f32.mrf.mxu0
  %259 = vmatprep.mubr.f32.mxu0 0.0
  %260 = vmatmul.mubr.f32.gmra.mxu0 %v86
  %v261 = vpop.f32.mrf.mxu0
  %v262 = vadd.f32 0.0, %v261
  %v263 = vpop.f32.mrf.mxu0
  %264 = vmatprep.mubr.f32.mxu0 0.0
  %265 = vmatmul.mubr.f32.gmra.mxu0 %v89
  %v266 = vpop.f32.mrf.mxu0
  %v267 = vadd.f32 0.0, %v266
  %v268 = vpop.f32.mrf.mxu0
  %269 = vmatprep.mubr.f32.mxu0 0.0
  %270 = vmatmul.mubr.f32.gmra.mxu0 %v92
  %v271 = vpop.f32.mrf.mxu0
  %v272 = vadd.f32 0.0, %v271
  %v273 = vpop.f32.mrf.mxu0
  %274 = vmatprep.mubr.f32.mxu0 0.0
  %275 = vmatmul.mubr.f32.gmra.mxu0 %v95
  %v276 = vpop.f32.mrf.mxu0
  %v277 = vadd.f32 0.0, %v276
  %v278 = vpop.f32.mrf.mxu0
  %279 = vmatprep.mubr.f32.mxu0 0.0
  %280 = vmatmul.mubr.f32.gmra.mxu0 %v98
  %v281 = vpop.f32.mrf.mxu0
  %v282 = vadd.f32 0.0, %v281
  %v283 = vpop.f32.mrf.mxu0
  %284 = vmatprep.mubr.f32.mxu0 0.0
  %285 = vmatmul.mubr.f32.gmra.mxu0 %v101
  %v286 = vpop.f32.mrf.mxu0
  %v287 = vadd.f32 0.0, %v286
  %v288 = vpop.f32.mrf.mxu0
  %289 = vmatprep.mubr.f32.mxu0 0.0
  %290 = vmatmul.mubr.f32.gmra.mxu0 %v104
  %v291 = vpop.f32.mrf.mxu0
  %v292 = vadd.f32 0.0, %v291
  %v293 = vpop.f32.mrf.mxu0
  %294 = vmatprep.mubr.f32.mxu0 0.0
  %295 = vmatmul.mubr.f32.gmra.mxu0 %v107
  %v296 = vpop.f32.mrf.mxu0
  %v297 = vadd.f32 0.0, %v296
  %v298 = vpop.f32.mrf.mxu0
  %299 = vmatprep.mubr.f32.mxu0 0.0
  %300 = vmatmul.mubr.f32.gmra.mxu0 %v110
  %v301 = vpop.f32.mrf.mxu0
  %v302 = vadd.f32 0.0, %v301
  %v303 = vpop.f32.mrf.mxu0
  %304 = vdwg.mxu0
  %v305 = vmul.f32 %v227, 1.442695
  %v306 = vpow.pop %v305
  %v307 = vmul.f32 %v232, 1.442695
  %v308 = vpow.pop %v307
  %v309 = vmul.f32 %v237, 1.442695
  %v310 = vpow.pop %v309
  %v311 = vmul.f32 %v242, 1.442695
  %v312 = vpow.pop %v311
  %v313 = vmul.f32 %v247, 1.442695
  %v314 = vpow.pop %v313
  %v315 = vmul.f32 %v252, 1.442695
  %v316 = vpow.pop %v315
  %v317 = vmul.f32 %v257, 1.442695
  %v318 = vpow.pop %v317
  %v319 = vmul.f32 %v262, 1.442695
  %v320 = vpow.pop %v319
  %v321 = vmul.f32 %v267, 1.442695
  %v322 = vpow.pop %v321
  %v323 = vmul.f32 %v272, 1.442695
  %v324 = vpow.pop %v323
  %v325 = vmul.f32 %v277, 1.442695
  %v326 = vpow.pop %v325
  %v327 = vmul.f32 %v282, 1.442695
  %v328 = vpow.pop %v327
  %v329 = vmul.f32 %v287, 1.442695
  %v330 = vpow.pop %v329
  %v331 = vmul.f32 %v292, 1.442695
  %v332 = vpow.pop %v331
  %v333 = vmul.f32 %v297, 1.442695
  %v334 = vpow.pop %v333
  %v335 = vmul.f32 %v302, 1.442695
  %v336 = vpow.pop %v335
  %v337 = vld [vmem:[#allocation2] sm:$0xff]
  %v338 = vld [vmem:[#allocation2 + $0x8] sm:$0xff]
  %v339 = vld [vmem:[#allocation2 + $0x10] sm:$0xff]
  %v340 = vld [vmem:[#allocation2 + $0x18] sm:$0xff]
  %v341 = vld [vmem:[#allocation2 + $0x20] sm:$0xff]
  %v342 = vld [vmem:[#allocation2 + $0x28] sm:$0xff]
  %v343 = vld [vmem:[#allocation2 + $0x30] sm:$0xff]
  %v344 = vld [vmem:[#allocation2 + $0x38] sm:$0xff]
  %v345 = vld [vmem:[#allocation2 + $0x40] sm:$0xff]
  %v346 = vld [vmem:[#allocation2 + $0x48] sm:$0xff]
  %v347 = vld [vmem:[#allocation2 + $0x50] sm:$0xff]
  %v348 = vld [vmem:[#allocation2 + $0x58] sm:$0xff]
  %v349 = vld [vmem:[#allocation2 + $0x60] sm:$0xff]
  %v350 = vld [vmem:[#allocation2 + $0x68] sm:$0xff]
  %v351 = vld [vmem:[#allocation2 + $0x70] sm:$0xff]
  %v352 = vld [vmem:[#allocation2 + $0x78] sm:$0xff]
  %v353 = vadd.f32 %v337, %v306
  %v354 = vadd.f32 %v338, %v308
  %v355 = vadd.f32 %v339, %v310
  %v356 = vadd.f32 %v340, %v312
  %v357 = vadd.f32 %v341, %v314
  %v358 = vadd.f32 %v342, %v316
  %v359 = vadd.f32 %v343, %v318
  %v360 = vadd.f32 %v344, %v320
  %v361 = vadd.f32 %v345, %v322
  %v362 = vadd.f32 %v346, %v324
  %v363 = vadd.f32 %v347, %v326
  %v364 = vadd.f32 %v348, %v328
  %v365 = vadd.f32 %v349, %v330
  %v366 = vadd.f32 %v350, %v332
  %v367 = vadd.f32 %v351, %v334
  %v368 = vadd.f32 %v352, %v336
  %369 = vst [vmem:[#allocation2] sm:$0xff] %v353
  %370 = vst [vmem:[#allocation2 + $0x8] sm:$0xff] %v354
  %371 = vst [vmem:[#allocation2 + $0x10] sm:$0xff] %v355
  %372 = vst [vmem:[#allocation2 + $0x18] sm:$0xff] %v356
  %373 = vst [vmem:[#allocation2 + $0x20] sm:$0xff] %v357
  %374 = vst [vmem:[#allocation2 + $0x28] sm:$0xff] %v358
  %375 = vst [vmem:[#allocation2 + $0x30] sm:$0xff] %v359
  %376 = vst [vmem:[#allocation2 + $0x38] sm:$0xff] %v360
  %377 = vst [vmem:[#allocation2 + $0x40] sm:$0xff] %v361
  %378 = vst [vmem:[#allocation2 + $0x48] sm:$0xff] %v362
  %379 = vst [vmem:[#allocation2 + $0x50] sm:$0xff] %v363
  %380 = vst [vmem:[#allocation2 + $0x58] sm:$0xff] %v364
  %381 = vst [vmem:[#allocation2 + $0x60] sm:$0xff] %v365
  %382 = vst [vmem:[#allocation2 + $0x68] sm:$0xff] %v366
  %383 = vst [vmem:[#allocation2 + $0x70] sm:$0xff] %v367
  %384 = vst [vmem:[#allocation2 + $0x78] sm:$0xff] %v368
  // Predicated region
  $region14: #{tpu_custom_call.1} parent=0 // pred_check
    %p385 = pneg %p11
  $region15: #{tpu_custom_call.1} parent=0 // pred_check_branch
    %387 = sbr.rel (%p385) target = $region17
  $region16: #{tpu_custom_call.1} parent=0 // pred_region
    %v388 = vld [vmem:[#allocation2] sm:$0xff]
    %v389 = vld [vmem:[#allocation2 + $0x8] sm:$0xff]
    %v390 = vld [vmem:[#allocation2 + $0x10] sm:$0xff]
    %v391 = vld [vmem:[#allocation2 + $0x18] sm:$0xff]
    %v392 = vld [vmem:[#allocation2 + $0x20] sm:$0xff]
    %v393 = vld [vmem:[#allocation2 + $0x28] sm:$0xff]
    %v394 = vld [vmem:[#allocation2 + $0x30] sm:$0xff]
    %v395 = vld [vmem:[#allocation2 + $0x38] sm:$0xff]
    %v396 = vld [vmem:[#allocation2 + $0x40] sm:$0xff]
    %v397 = vld [vmem:[#allocation2 + $0x48] sm:$0xff]
    %v398 = vld [vmem:[#allocation2 + $0x50] sm:$0xff]
    %v399 = vld [vmem:[#allocation2 + $0x58] sm:$0xff]
    %v400 = vld [vmem:[#allocation2 + $0x60] sm:$0xff]
    %v401 = vld [vmem:[#allocation2 + $0x68] sm:$0xff]
    %v402 = vld [vmem:[#allocation2 + $0x70] sm:$0xff]
    %v403 = vld [vmem:[#allocation2 + $0x78] sm:$0xff]
    %404 = vadd.xlane.f32.xlu0 %v388
    %v405 = vpop.xlane.xlu0 %404
    %406 = vadd.xlane.f32.xlu0 %v389
    %v407 = vpop.xlane.xlu0 %406
    %408 = vadd.xlane.f32.xlu0 %v390
    %v409 = vpop.xlane.xlu0 %408
    %410 = vadd.xlane.f32.xlu0 %v391
    %v411 = vpop.xlane.xlu0 %410
    %412 = vadd.xlane.f32.xlu0 %v392
    %v413 = vpop.xlane.xlu0 %412
    %414 = vadd.xlane.f32.xlu0 %v393
    %v415 = vpop.xlane.xlu0 %414
    %416 = vadd.xlane.f32.xlu0 %v394
    %v417 = vpop.xlane.xlu0 %416
    %418 = vadd.xlane.f32.xlu0 %v395
    %v419 = vpop.xlane.xlu0 %418
    %420 = vadd.xlane.f32.xlu0 %v396
    %v421 = vpop.xlane.xlu0 %420
    %422 = vadd.xlane.f32.xlu0 %v397
    %v423 = vpop.xlane.xlu0 %422
    %424 = vadd.xlane.f32.xlu0 %v398
    %v425 = vpop.xlane.xlu0 %424
    %426 = vadd.xlane.f32.xlu0 %v399
    %v427 = vpop.xlane.xlu0 %426
    %428 = vadd.xlane.f32.xlu0 %v400
    %v429 = vpop.xlane.xlu0 %428
    %430 = vadd.xlane.f32.xlu0 %v401
    %v431 = vpop.xlane.xlu0 %430
    %432 = vadd.xlane.f32.xlu0 %v402
    %v433 = vpop.xlane.xlu0 %432
    %434 = vadd.xlane.f32.xlu0 %v403
    %v435 = vpop.xlane.xlu0 %434
    %vm436 = vcmask 7168
    %437 = vst.msk [vmem:[%s2] sm:$0xff] %vm436, %v405
    %438 = vst.msk [vmem:[%s2 + $0x8] sm:$0xff] %vm436, %v407
    %439 = vst.msk [vmem:[%s2 + $0x10] sm:$0xff] %vm436, %v409
    %440 = vst.msk [vmem:[%s2 + $0x18] sm:$0xff] %vm436, %v411
    %441 = vst.msk [vmem:[%s2 + $0x20] sm:$0xff] %vm436, %v413
    %442 = vst.msk [vmem:[%s2 + $0x28] sm:$0xff] %vm436, %v415
    %443 = vst.msk [vmem:[%s2 + $0x30] sm:$0xff] %vm436, %v417
    %444 = vst.msk [vmem:[%s2 + $0x38] sm:$0xff] %vm436, %v419
    %445 = vst.msk [vmem:[%s2 + $0x40] sm:$0xff] %vm436, %v421
    %446 = vst.msk [vmem:[%s2 + $0x48] sm:$0xff] %vm436, %v423
    %447 = vst.msk [vmem:[%s2 + $0x50] sm:$0xff] %vm436, %v425
    %448 = vst.msk [vmem:[%s2 + $0x58] sm:$0xff] %vm436, %v427
    %449 = vst.msk [vmem:[%s2 + $0x60] sm:$0xff] %vm436, %v429
    %450 = vst.msk [vmem:[%s2 + $0x68] sm:$0xff] %vm436, %v431
    %451 = vst.msk [vmem:[%s2 + $0x70] sm:$0xff] %vm436, %v433
    %452 = vst.msk [vmem:[%s2 + $0x78] sm:$0xff] %vm436, %v435
  $region17: #{tpu_custom_call.1} parent=0 // pred_fallthru
    _
  // Predicated region
  $region18: #{tpu_custom_call.1} parent=0 // pred_check
    _
  $region19: #{tpu_custom_call.1} parent=0 // pred_check_branch
    %454 = sbr.rel (0) target = $region21
  $region20: #{tpu_custom_call.1} parent=0 // pred_region
    _
  $region21: #{tpu_custom_call.1} parent=0 // pred_fallthru
    _
  // Predicated region
  $region22: #{tpu_custom_call.1} parent=0 // pred_check
    _
  $region23: #{tpu_custom_call.1} parent=0 // pred_check_branch
    %456 = sbr.rel (0) target = $region25
  $region24: #{tpu_custom_call.1} parent=0 // pred_region
    _
  $region25: #{tpu_custom_call.1} parent=0 // pred_fallthru
    _

</llo_original>
